<compile_context>
chip_gen: v6e
topology: v6e:2x2x1
jax: 0.10.0
libtpu: 0.0.40
codegen_flags: <defaults>
</compile_context>

<pallas_src>
import functools

import numpy as np
import jax
import jax.numpy as jnp
from jax.experimental import pallas as pl
from jax.experimental.pallas import tpu as pltpu


# --------------------------- interpolation matrices --------------------------

@functools.lru_cache(maxsize=None)
def _interp_matrix_np(in_size, out_size):
    """Linear interp matrix [out_size, in_size] with align_corners=True,
    matching nn.Upsample(scale_factor=2, mode='bilinear', align_corners=True)."""
    if in_size == 1:
        return np.ones((out_size, 1), dtype=np.float32)
    i = np.arange(out_size, dtype=np.float64)
    src = i * (in_size - 1) / (out_size - 1)
    lo = np.clip(np.floor(src).astype(np.int64), 0, in_size - 2)
    frac = src - lo
    a = np.zeros((out_size, in_size), dtype=np.float64)
    a[np.arange(out_size), lo] = 1.0 - frac
    a[np.arange(out_size), lo + 1] += frac
    return a.astype(np.float32)


@functools.lru_cache(maxsize=None)
def _upsample_kron_np(h, w):
    """K[h*W+w, u*2W+v] = A_h[u,h] * A_w[v,w]: bilinear x2 upsample of a
    row-major flattened (H, W) plane as one (H*W, 4*H*W) matmul."""
    ah = _interp_matrix_np(h, 2 * h)                 # (2H, H)
    aw = _interp_matrix_np(w, 2 * w)                 # (2W, W)
    return np.kron(ah.T, aw.T).astype(np.float32)    # (H*W, 4*H*W)


# ------------------------- VMEM / tiling configuration -----------------------

def _vmem_limit_bytes():
    """Generation-aware scoped VMEM limit (v7x: 64 MiB/TC vs 128 MiB on v5e/v6e)."""
    try:
        cap = pltpu.get_tpu_info().vmem_capacity_bytes
    except Exception:  # info unavailable (e.g. interpret mode)
        cap = 128 << 20
    return int(max(24 << 20, min(cap * 3 // 8, 64 << 20)))


# ------------------- fused per-level kernel (primary path) -------------------

def _make_fused_level_kernel(has_res_in, has_res_out, emit_up):
    """Fused 1x1-conv + bilinear-x2-upsample (+ optional residual adds).

    Ref order: x, [res_in], w, b, kron, [res_out], <outputs...>
    Outputs: [up] if emit_up, then [up + res_out] if has_res_out.
    """
    def kernel(*refs):
        it = iter(refs)
        x_ref = next(it)
        r_in_ref = next(it) if has_res_in else None
        w_ref = next(it)
        b_ref = next(it)
        k_ref = next(it)
        r_out_ref = next(it) if has_res_out else None
        out_refs = list(it)

        x = x_ref[0]                                       # (Cin, H*W)
        if has_res_in:
            x = x + r_in_ref[0]
        # 1x1 conv on channels: (Cout, Cin) @ (Cin, H*W) + (Cout, 1)
        y = jnp.dot(w_ref[...], x,
                    preferred_element_type=jnp.float32) + b_ref[...]
        # bilinear x2 (align_corners=True) as one lane-dense matmul
        z = jnp.dot(y, k_ref[...], preferred_element_type=jnp.float32)

        oi = 0
        if emit_up:
            out_refs[oi][0] = z.astype(out_refs[oi].dtype)
            oi += 1
        if has_res_out:
            out_refs[oi][0] = (z + r_out_ref[0].astype(jnp.float32)
                               ).astype(out_refs[oi].dtype)
    return kernel


def _fused_level(x, w, b2, res_in, res_out, emit_up, vmem_limit):
    B, Cin, H, W = x.shape
    Cout = w.shape[0]
    HW, HW4 = H * W, 4 * H * W
    kron = jnp.asarray(_upsample_kron_np(H, W))            # (HW, 4HW)

    x2 = x.reshape(B, Cin, HW)                             # free HBM reshape
    operands = [x2]
    in_specs = [pl.BlockSpec((1, Cin, HW), lambda i: (i, 0, 0))]
    if res_in is not None:
        operands.append(res_in.reshape(B, Cin, HW))
        in_specs.append(pl.BlockSpec((1, Cin, HW), lambda i: (i, 0, 0)))
    operands += [w, b2, kron]
    in_specs += [pl.BlockSpec((Cout, Cin), lambda i: (0, 0)),
                 pl.BlockSpec((Cout, 1), lambda i: (0, 0)),
                 pl.BlockSpec((HW, HW4), lambda i: (0, 0))]
    if res_out is not None:
        operands.append(res_out.reshape(B, Cout, HW4))
        in_specs.append(pl.BlockSpec((1, Cout, HW4), lambda i: (i, 0, 0)))

    n_out = int(emit_up) + int(res_out is not None)
    out_spec = pl.BlockSpec((1, Cout, HW4), lambda i: (i, 0, 0))
    out_shape = jax.ShapeDtypeStruct((B, Cout, HW4), x.dtype)

    kernel = _make_fused_level_kernel(res_in is not None, res_out is not None,
                                      emit_up)
    result = pl.pallas_call(
        kernel,
        grid=(B,),  # >= 2 steps for B >= 2 -> both v7x TensorCores engaged
        in_specs=in_specs,
        out_specs=tuple([out_spec] * n_out) if n_out > 1 else out_spec,
        out_shape=tuple([out_shape] * n_out) if n_out > 1 else out_shape,
        compiler_params=pltpu.CompilerParams(
            dimension_semantics=("parallel",),
            vmem_limit_bytes=vmem_limit),
    )(*operands)

    if n_out == 1:
        return result.reshape(B, Cout, 2 * H, 2 * W)
    return tuple(r.reshape(B, Cout, 2 * H, 2 * W) for r in result)


# ----------------- separable fallback (large planes only) --------------------

def _conv1x1_kernel(x_ref, w_ref, b_ref, o_ref):
    o_ref[0] = (jnp.dot(w_ref[...], x_ref[0],
                        preferred_element_type=jnp.float32)
                + b_ref[...]).astype(o_ref.dtype)


def _add_conv1x1_kernel(x_ref, r_ref, w_ref, b_ref, o_ref):
    o_ref[0] = (jnp.dot(w_ref[...], x_ref[0] + r_ref[0],
                        preferred_element_type=jnp.float32)
                + b_ref[...]).astype(o_ref.dtype)


def _spatial_tile(hw):
    for ts in (8192, 4096, 2048, 1024, 512, 256, 128):
        if hw % ts == 0:
            return ts
    return None


def _conv1x1_flat(x3, w, b2, res3, vmem_limit):
    B, Cin, HW = x3.shape
    Cout = w.shape[0]
    ts = _spatial_tile(HW)
    hw_pad = HW
    if ts is None:  # pad to a lane-dense multiple of 128 (no full-HW fallback)
        hw_pad = ((HW + 127) // 128) * 128
        pad = ((0, 0), (0, 0), (0, hw_pad - HW))
        x3 = jnp.pad(x3, pad)
        if res3 is not None:
            res3 = jnp.pad(res3, pad)
        ts = _spatial_tile(hw_pad)
    grid = (B, hw_pad // ts)

    x_spec = pl.BlockSpec((1, Cin, ts), lambda i, j: (i, 0, j))
    w_spec = pl.BlockSpec((Cout, Cin), lambda i, j: (0, 0))
    b_spec = pl.BlockSpec((Cout, 1), lambda i, j: (0, 0))
    o_spec = pl.BlockSpec((1, Cout, ts), lambda i, j: (i, 0, j))
    if res3 is None:
        kernel, operands, in_specs = (_conv1x1_kernel, (x3, w, b2),
                                      [x_spec, w_spec, b_spec])
    else:
        kernel, operands, in_specs = (_add_conv1x1_kernel, (x3, res3, w, b2),
                                      [x_spec, x_spec, w_spec, b_spec])
    out = pl.pallas_call(
        kernel, grid=grid, in_specs=in_specs, out_specs=o_spec,
        out_shape=jax.ShapeDtypeStruct((B, Cout, hw_pad), x3.dtype),
        compiler_params=pltpu.CompilerParams(
            dimension_semantics=("parallel", "parallel"),
            vmem_limit_bytes=vmem_limit),
    )(*operands)
    return out[:, :, :HW]


def _bilinear_sep(x_ref, awt_ref, ah_ref):
    # x: (P, H, W); awt: (W, 2W); ah: (2H, H)  ->  (P, 2H, 2W)  (f32)
    p, h, w = x_ref.shape
    x = x_ref[...].astype(jnp.float32)
    yw = jnp.dot(x.reshape(p * h, w), awt_ref[...],
                 preferred_element_type=jnp.float32).reshape(p, h, 2 * w)
    # contract over h without materializing per-plane copies of ah
    return jnp.einsum('uh,phv->puv', ah_ref[...], yw,
                      preferred_element_type=jnp.float32)


def _up_kernel(x_ref, awt_ref, ah_ref, up_ref):
    up_ref[...] = _bilinear_sep(x_ref, awt_ref, ah_ref).astype(up_ref.dtype)


def _up_add_kernel(x_ref, r_ref, awt_ref, ah_ref, up_ref, sum_ref):
    z = _bilinear_sep(x_ref, awt_ref, ah_ref)
    up_ref[...] = z.astype(up_ref.dtype)
    sum_ref[...] = (z + r_ref[...].astype(jnp.float32)).astype(sum_ref.dtype)


def _up_add_sum_only_kernel(x_ref, r_ref, awt_ref, ah_ref, sum_ref):
    z = _bilinear_sep(x_ref, awt_ref, ah_ref)
    sum_ref[...] = (z + r_ref[...].astype(jnp.float32)).astype(sum_ref.dtype)


def _plane_tile(n_planes, h, w, n_big_streams, vmem_limit):
    """Planes per grid step: fill ~half of the VMEM limit (double-buffering),
    keep >= 2 grid steps (v7x megacore), and divide n_planes exactly."""
    per_plane = 4 * (2 * h * w + 2 * h * w + 2 * n_big_streams * 4 * h * w)
    p = max(1, min(n_planes, (vmem_limit // 2) // max(per_plane, 1)))
    if n_planes >= 2:
        p = min(p, (n_planes + 1) // 2)
    while n_planes % p:
        p -= 1
    return p


def _upsample2x_sep(x, res_out, emit_up, vmem_limit):
    B, C, H, W = x.shape
    H2, W2 = 2 * H, 2 * W
    BC = B * C
    awt = jnp.asarray(_interp_matrix_np(W, W2)).T      # (W, 2W)
    ah = jnp.asarray(_interp_matrix_np(H, H2))         # (2H, H)

    n_big = 1 + (0 if res_out is None else (1 + int(emit_up)))
    P = _plane_tile(BC, H, W, n_big, vmem_limit)
    grid = (BC // P,)
    x3 = x.reshape(BC, H, W)

    x_spec = pl.BlockSpec((P, H, W), lambda i: (i, 0, 0))
    awt_spec = pl.BlockSpec((W, W2), lambda i: (0, 0))
    ah_spec = pl.BlockSpec((H2, H), lambda i: (0, 0))
    o_spec = pl.BlockSpec((P, H2, W2), lambda i: (i, 0, 0))
    o_shape = jax.ShapeDtypeStruct((BC, H2, W2), x.dtype)
    params = pltpu.CompilerParams(dimension_semantics=("parallel",),
                                  vmem_limit_bytes=vmem_limit)

    if res_out is None:
        out = pl.pallas_call(_up_kernel, grid=grid,
                             in_specs=[x_spec, awt_spec, ah_spec],
                             out_specs=o_spec, out_shape=o_shape,
                             compiler_params=params)(x3, awt, ah)
        return out.reshape(B, C, H2, W2)

    r3 = res_out.reshape(BC, H2, W2)
    if emit_up:
        up, s = pl.pallas_call(_up_add_kernel, grid=grid,
                               in_specs=[x_spec, o_spec, awt_spec, ah_spec],
                               out_specs=(o_spec, o_spec),
                               out_shape=(o_shape, o_shape),
                               compiler_params=params)(x3, r3, awt, ah)
        return up.reshape(B, C, H2, W2), s.reshape(B, C, H2, W2)
    s = pl.pallas_call(_up_add_sum_only_kernel, grid=grid,
                       in_specs=[x_spec, o_spec, awt_spec, ah_spec],
                       out_specs=o_spec, out_shape=o_shape,
                       compiler_params=params)(x3, r3, awt, ah)
    return s.reshape(B, C, H2, W2)


# ------------------------------ level dispatcher -----------------------------

def conv1x1_upsample2x(x, w, b, *, res_in=None, res_out=None, emit_up=True,
                       vmem_limit=None):
    """One SeqAdd pyramid level:
         y   = conv1x1(x + res_in)        (res_in optional)
         up  = bilinear_x2(y)             (align_corners=True)
       Returns up, (up, up+res_out), or up+res_out depending on flags."""
    assert emit_up or res_out is not None
    if vmem_limit is None:
        vmem_limit = _vmem_limit_bytes()
    B, Cin, H, W = x.shape
    Cout = w.shape[0]
    HW, HW4 = H * W, 4 * H * W
    b2 = b.reshape(Cout, 1)

    # Fused single-kernel path whenever the per-step working set fits VMEM.
    n_out = int(emit_up) + int(res_out is not None)
    est = 4 * (HW * HW4                                            # Kron matrix
               + 2 * (1 + int(res_in is not None)) * Cin * HW      # dbl-buf in
               + 2 * (n_out + int(res_out is not None)) * Cout * HW4
               + Cout * (HW + HW4) + Cout * Cin)                   # temporaries
    if est <= vmem_limit // 2:
        return _fused_level(x, w, b2, res_in, res_out, emit_up, vmem_limit)

    # Separable fallback for large planes (two pallas_calls per level).
    res3 = None if res_in is None else res_in.reshape(B, Cin, HW)
    y = _conv1x1_flat(x.reshape(B, Cin, HW), w, b2, res3, vmem_limit)
    return _upsample2x_sep(y.reshape(B, Cout, H, W), res_out, emit_up,
                           vmem_limit)


# ------------------------------- SeqAdd forward ------------------------------

def init_seq_add_params(key, c3_channels, c4_channels, c5_channels):
    k1, k2, k3, k4 = jax.random.split(key, 4)
    # Conv2d 1x1 weights stored as [Cout, Cin].
    return dict(
        w_c4=jax.random.normal(k1, (c4_channels, c5_channels), jnp.float32) * 0.1,
        b_c4=jax.random.normal(k2, (c4_channels,), jnp.float32) * 0.1,
        w_c3=jax.random.normal(k3, (c3_channels, c4_channels), jnp.float32) * 0.1,
        b_c3=jax.random.normal(k4, (c3_channels,), jnp.float32) * 0.1,
    )


@functools.partial(jax.jit, static_argnames=("is_final_stage",))
def seq_add_forward(params, c3, c4, c5, is_final_stage):
    vmem_limit = _vmem_limit_bytes()
    # p5 = upsample1(conv2d_c4(c5))                    -- one fused kernel
    p5 = conv1x1_upsample2x(c5, params["w_c4"], params["b_c4"],
                            vmem_limit=vmem_limit)
    # p4 = upsample2(conv2d_c3(p5 + c4)); p3 = p4 + c3 -- one fused kernel.
    # When not the final stage, p4 is dead -> sum-only variant (no p4 store).
    if is_final_stage:
        p4, p3 = conv1x1_upsample2x(p5, params["w_c3"], params["b_c3"],
                                    res_in=c4, res_out=c3, emit_up=True,
                                    vmem_limit=vmem_limit)
        return (p3, p4, p5)
    p3 = conv1x1_upsample2x(p5, params["w_c3"], params["b_c3"],
                            res_in=c4, res_out=c3, emit_up=False,
                            vmem_limit=vmem_limit)
    return p3


# ----------------------------- pure-JAX reference ----------------------------

def _reference_forward(params, c3, c4, c5):
    hp = jax.lax.Precision.HIGHEST

    def conv(x, w, b):
        return (jnp.einsum('oc,bchw->bohw', w, x, precision=hp)
                + b[None, :, None, None])

    def up(x):
        _, _, H, W = x.shape
        ah = jnp.asarray(_interp_matrix_np(H, 2 * H))
        aw = jnp.asarray(_interp_matrix_np(W, 2 * W))
        return jnp.einsum('uh,bchw,vw->bcuv', ah, x, aw, precision=hp)

    p5 = up(conv(c5, params["w_c4"], params["b_c4"]))
    p4 = up(conv(p5 + c4, params["w_c3"], params["b_c3"]))
    p3 = p4 + c3
    return p3, p4, p5


# ------------------------------------ main ------------------------------------

if __name__ == "__main__":
    B = 2
    c3_channels, c4_channels, c5_channels = 4, 8, 16
    H5 = W5 = 4  # c4 spatial 8x8, c3 spatial 16x16

    key = jax.random.PRNGKey(0)
    kp, k3, k4, k5 = jax.random.split(key, 4)

    params = init_seq_add_params(kp, c3_channels, c4_channels, c5_channels)
    c3 = jax.random.normal(k3, (B, c3_channels, 4 * H5, 4 * W5), jnp.float32)
    c4 = jax.random.normal(k4, (B, c4_channels, 2 * H5, 2 * W5), jnp.float32)
    c5 = jax.random.normal(k5, (B, c5_channels, H5, W5), jnp.float32)

    p3, p4, p5 = seq_add_forward(params, c3, c4, c5, is_final_stage=True)
    jax.block_until_ready((p3, p4, p5))

    assert p3.shape == (B, c3_channels, 4 * H5, 4 * W5)
    assert p4.shape == (B, c3_channels, 4 * H5, 4 * W5)
    assert p5.shape == (B, c4_channels, 2 * H5, 2 * W5)

    # numerical check against a pure-JAX reference (tight: all-f32 pipeline;
    # remaining slack is MXU f32 multi-pass rounding differences)
    r3, r4, r5 = _reference_forward(params, c3, c4, c5)
    np.testing.assert_allclose(np.asarray(p5), np.asarray(r5), rtol=1e-4, atol=1e-5)
    np.testing.assert_allclose(np.asarray(p4), np.asarray(r4), rtol=1e-4, atol=1e-5)
    np.testing.assert_allclose(np.asarray(p3), np.asarray(r3), rtol=1e-4, atol=1e-5)

    # non-final-stage branch: sum-only kernel (p4 never stored), returns p3 only
    p3_only = seq_add_forward(params, c3, c4, c5, is_final_stage=False)
    jax.block_until_ready(p3_only)
    assert p3_only.shape == p3.shape
    np.testing.assert_allclose(np.asarray(p3_only), np.asarray(r3),
                               rtol=1e-4, atol=1e-5)

    print("KERNEL_OK")
</pallas_src>

<mosaic_0001>
module attributes {stable_mosaic.version = 11 : i64} {
  func.func @kernel(%arg0: i32, %arg1: memref<1x16x16xf32, #tpu.memory_space<vmem>>, %arg2: memref<8x16xf32, #tpu.memory_space<vmem>>, %arg3: memref<8x1xf32, #tpu.memory_space<vmem>>, %arg4: memref<16x64xf32, #tpu.memory_space<vmem>>, %arg5: memref<1x8x64xf32, #tpu.memory_space<vmem>>) attributes {dimension_semantics = [#tpu.dimension_semantics<parallel>], iteration_bounds = array<i64: 2>, scalar_prefetch = 0 : i64, scratch_operands = 0 : i64, tpu.core_type = #tpu.core_type<tc>, window_params = [{transform_indices = @transform_0, window_bounds = array<i64: 1, 16, 16>}, {pipeline_mode = #tpu.pipeline_mode<synchronous>, transform_indices = @transform_1, window_bounds = array<i64: 8, 16>}, {pipeline_mode = #tpu.pipeline_mode<synchronous>, transform_indices = @transform_2, window_bounds = array<i64: 8, 1>}, {pipeline_mode = #tpu.pipeline_mode<synchronous>, transform_indices = @transform_3, window_bounds = array<i64: 16, 64>}, {transform_indices = @transform_4, window_bounds = array<i64: 1, 8, 64>}]} {
    %c0 = arith.constant 0 : index
    %c0_0 = arith.constant 0 : index
    %c0_1 = arith.constant 0 : index
    %0 = vector.load %arg1[%c0, %c0_0, %c0_1] : memref<1x16x16xf32, #tpu.memory_space<vmem>>, vector<1x16x16xf32>
    %1 = vector.shape_cast %0 : vector<1x16x16xf32> to vector<16x16xf32>
    %c0_2 = arith.constant 0 : index
    %c0_3 = arith.constant 0 : index
    %2 = vector.load %arg2[%c0_2, %c0_3] : memref<8x16xf32, #tpu.memory_space<vmem>>, vector<8x16xf32>
    %cst = arith.constant dense<0.000000e+00> : vector<8x16xf32>
    %3 = tpu.matmul %2, %1, %cst {dimension_numbers = #tpu.dot_dimension_numbers<[1], [0], [0], [1], [0, 0, 1, 1], [], []>} : vector<8x16xf32>, vector<16x16xf32>, vector<8x16xf32> -> vector<8x16xf32>
    %c0_4 = arith.constant 0 : index
    %c0_5 = arith.constant 0 : index
    %4 = vector.load %arg3[%c0_4, %c0_5] : memref<8x1xf32, #tpu.memory_space<vmem>>, vector<8x1xf32>
    %5 = vector.broadcast %4 : vector<8x1xf32> to vector<8x16xf32>
    %6 = arith.addf %3, %5 : vector<8x16xf32>
    %c0_6 = arith.constant 0 : index
    %c0_7 = arith.constant 0 : index
    %7 = vector.load %arg4[%c0_6, %c0_7] : memref<16x64xf32, #tpu.memory_space<vmem>>, vector<16x64xf32>
    %cst_8 = arith.constant dense<0.000000e+00> : vector<8x64xf32>
    %8 = tpu.matmul %6, %7, %cst_8 {dimension_numbers = #tpu.dot_dimension_numbers<[1], [0], [0], [1], [0, 0, 1, 1], [], []>} : vector<8x16xf32>, vector<16x64xf32>, vector<8x64xf32> -> vector<8x64xf32>
    %c0_9 = arith.constant 0 : index
    %c0_10 = arith.constant 0 : index
    %c0_11 = arith.constant 0 : index
    %9 = vector.load %arg5[%c0_9, %c0_10, %c0_11] : memref<1x8x64xf32, #tpu.memory_space<vmem>>, vector<1x8x64xf32>
    %10 = vector.shape_cast %9 : vector<1x8x64xf32> to vector<8x64xf32>
    %11 = vector.shape_cast %8 : vector<8x64xf32> to vector<1x8x64xf32>
    tpu.vector_store %arg5[%c0_9, %c0_10, %c0_11], %11 {strides = array<i32>} : memref<1x8x64xf32, #tpu.memory_space<vmem>>, vector<1x8x64xf32>,
    return
  }
  func.func @transform_0(%arg0: i32) -> (i32, i32, i32) {
    %c0_i32 = arith.constant 0 : i32
    %c0_i32_0 = arith.constant 0 : i32
    %c0_i32_1 = arith.constant 0 : i32
    return %arg0, %c0_i32, %c0_i32_0 : i32, i32, i32
  }
  func.func @transform_1(%arg0: i32) -> (i32, i32) {
    %c0_i32 = arith.constant 0 : i32
    %c0_i32_0 = arith.constant 0 : i32
    %c0_i32_1 = arith.constant 0 : i32
    return %c0_i32, %c0_i32_0 : i32, i32
  }
  func.func @transform_2(%arg0: i32) -> (i32, i32) {
    %c0_i32 = arith.constant 0 : i32
    %c0_i32_0 = arith.constant 0 : i32
    %c0_i32_1 = arith.constant 0 : i32
    return %c0_i32, %c0_i32_0 : i32, i32
  }
  func.func @transform_3(%arg0: i32) -> (i32, i32) {
    %c0_i32 = arith.constant 0 : i32
    %c0_i32_0 = arith.constant 0 : i32
    %c0_i32_1 = arith.constant 0 : i32
    return %c0_i32, %c0_i32_0 : i32, i32
  }
  func.func @transform_4(%arg0: i32) -> (i32, i32, i32) {
    %c0_i32 = arith.constant 0 : i32
    %c0_i32_0 = arith.constant 0 : i32
    %c0_i32_1 = arith.constant 0 : i32
    return %arg0, %c0_i32, %c0_i32_0 : i32, i32, i32
  }
}

module attributes {stable_mosaic.version = 11 : i64} {
  func.func @kernel(%arg0: i32, %arg1: memref<1x8x64xf32, #tpu.memory_space<vmem>>, %arg2: memref<1x8x64xf32, #tpu.memory_space<vmem>>, %arg3: memref<4x8xf32, #tpu.memory_space<vmem>>, %arg4: memref<4x1xf32, #tpu.memory_space<vmem>>, %arg5: memref<64x256xf32, #tpu.memory_space<vmem>>, %arg6: memref<1x4x256xf32, #tpu.memory_space<vmem>>, %arg7: memref<1x4x256xf32, #tpu.memory_space<vmem>>, %arg8: memref<1x4x256xf32, #tpu.memory_space<vmem>>) attributes {dimension_semantics = [#tpu.dimension_semantics<parallel>], iteration_bounds = array<i64: 2>, scalar_prefetch = 0 : i64, scratch_operands = 0 : i64, tpu.core_type = #tpu.core_type<tc>, window_params = [{transform_indices = @transform_0, window_bounds = array<i64: 1, 8, 64>}, {transform_indices = @transform_1, window_bounds = array<i64: 1, 8, 64>}, {pipeline_mode = #tpu.pipeline_mode<synchronous>, transform_indices = @transform_2, window_bounds = array<i64: 4, 8>}, {pipeline_mode = #tpu.pipeline_mode<synchronous>, transform_indices = @transform_3, window_bounds = array<i64: 4, 1>}, {pipeline_mode = #tpu.pipeline_mode<synchronous>, transform_indices = @transform_4, window_bounds = array<i64: 64, 256>}, {transform_indices = @transform_5, window_bounds = array<i64: 1, 4, 256>}, {transform_indices = @transform_6, window_bounds = array<i64: 1, 4, 256>}, {transform_indices = @transform_7, window_bounds = array<i64: 1, 4, 256>}]} {
    %c0 = arith.constant 0 : index
    %c0_0 = arith.constant 0 : index
    %c0_1 = arith.constant 0 : index
    %0 = vector.load %arg1[%c0, %c0_0, %c0_1] : memref<1x8x64xf32, #tpu.memory_space<vmem>>, vector<1x8x64xf32>
    %1 = vector.shape_cast %0 : vector<1x8x64xf32> to vector<8x64xf32>
    %c0_2 = arith.constant 0 : index
    %c0_3 = arith.constant 0 : index
    %c0_4 = arith.constant 0 : index
    %2 = vector.load %arg2[%c0_2, %c0_3, %c0_4] : memref<1x8x64xf32, #tpu.memory_space<vmem>>, vector<1x8x64xf32>
    %3 = vector.shape_cast %2 : vector<1x8x64xf32> to vector<8x64xf32>
    %4 = arith.addf %1, %3 : vector<8x64xf32>
    %c0_5 = arith.constant 0 : index
    %c0_6 = arith.constant 0 : index
    %5 = vector.load %arg3[%c0_5, %c0_6] : memref<4x8xf32, #tpu.memory_space<vmem>>, vector<4x8xf32>
    %cst = arith.constant dense<0.000000e+00> : vector<4x64xf32>
    %6 = tpu.matmul %5, %4, %cst {dimension_numbers = #tpu.dot_dimension_numbers<[1], [0], [0], [1], [0, 0, 1, 1], [], []>} : vector<4x8xf32>, vector<8x64xf32>, vector<4x64xf32> -> vector<4x64xf32>
    %c0_7 = arith.constant 0 : index
    %c0_8 = arith.constant 0 : index
    %7 = vector.load %arg4[%c0_7, %c0_8] : memref<4x1xf32, #tpu.memory_space<vmem>>, vector<4x1xf32>
    %8 = vector.broadcast %7 : vector<4x1xf32> to vector<4x64xf32>
    %9 = arith.addf %6, %8 : vector<4x64xf32>
    %c0_9 = arith.constant 0 : index
    %c0_10 = arith.constant 0 : index
    %10 = vector.load %arg5[%c0_9, %c0_10] : memref<64x256xf32, #tpu.memory_space<vmem>>, vector<64x256xf32>
    %cst_11 = arith.constant dense<0.000000e+00> : vector<4x256xf32>
    %11 = tpu.matmul %9, %10, %cst_11 {dimension_numbers = #tpu.dot_dimension_numbers<[1], [0], [0], [1], [0, 0, 1, 1], [], []>} : vector<4x64xf32>, vector<64x256xf32>, vector<4x256xf32> -> vector<4x256xf32>
    %c0_12 = arith.constant 0 : index
    %c0_13 = arith.constant 0 : index
    %c0_14 = arith.constant 0 : index
    %12 = vector.load %arg7[%c0_12, %c0_13, %c0_14] : memref<1x4x256xf32, #tpu.memory_space<vmem>>, vector<1x4x256xf32>
    %13 = vector.shape_cast %12 : vector<1x4x256xf32> to vector<4x256xf32>
    %14 = vector.shape_cast %11 : vector<4x256xf32> to vector<1x4x256xf32>
    tpu.vector_store %arg7[%c0_12, %c0_13, %c0_14], %14 {strides = array<i32>} : memref<1x4x256xf32, #tpu.memory_space<vmem>>, vector<1x4x256xf32>,
    %c0_15 = arith.constant 0 : index
    %c0_16 = arith.constant 0 : index
    %c0_17 = arith.constant 0 : index
    %15 = vector.load %arg6[%c0_15, %c0_16, %c0_17] : memref<1x4x256xf32, #tpu.memory_space<vmem>>, vector<1x4x256xf32>
    %16 = vector.shape_cast %15 : vector<1x4x256xf32> to vector<4x256xf32>
    %17 = arith.addf %11, %16 : vector<4x256xf32>
    %c0_18 = arith.constant 0 : index
    %c0_19 = arith.constant 0 : index
    %c0_20 = arith.constant 0 : index
    %18 = vector.load %arg8[%c0_18, %c0_19, %c0_20] : memref<1x4x256xf32, #tpu.memory_space<vmem>>, vector<1x4x256xf32>
    %19 = vector.shape_cast %18 : vector<1x4x256xf32> to vector<4x256xf32>
    %20 = vector.shape_cast %17 : vector<4x256xf32> to vector<1x4x256xf32>
    tpu.vector_store %arg8[%c0_18, %c0_19, %c0_20], %20 {strides = array<i32>} : memref<1x4x256xf32, #tpu.memory_space<vmem>>, vector<1x4x256xf32>,
    return
  }
  func.func @transform_0(%arg0: i32) -> (i32, i32, i32) {
    %c0_i32 = arith.constant 0 : i32
    %c0_i32_0 = arith.constant 0 : i32
    %c0_i32_1 = arith.constant 0 : i32
    return %arg0, %c0_i32, %c0_i32_0 : i32, i32, i32
  }
  func.func @transform_1(%arg0: i32) -> (i32, i32, i32) {
    %c0_i32 = arith.constant 0 : i32
    %c0_i32_0 = arith.constant 0 : i32
    %c0_i32_1 = arith.constant 0 : i32
    return %arg0, %c0_i32, %c0_i32_0 : i32, i32, i32
  }
  func.func @transform_2(%arg0: i32) -> (i32, i32) {
    %c0_i32 = arith.constant 0 : i32
    %c0_i32_0 = arith.constant 0 : i32
    %c0_i32_1 = arith.constant 0 : i32
    return %c0_i32, %c0_i32_0 : i32, i32
  }
  func.func @transform_3(%arg0: i32) -> (i32, i32) {
    %c0_i32 = arith.constant 0 : i32
    %c0_i32_0 = arith.constant 0 : i32
    %c0_i32_1 = arith.constant 0 : i32
    return %c0_i32, %c0_i32_0 : i32, i32
  }
  func.func @transform_4(%arg0: i32) -> (i32, i32) {
    %c0_i32 = arith.constant 0 : i32
    %c0_i32_0 = arith.constant 0 : i32
    %c0_i32_1 = arith.constant 0 : i32
    return %c0_i32, %c0_i32_0 : i32, i32
  }
  func.func @transform_5(%arg0: i32) -> (i32, i32, i32) {
    %c0_i32 = arith.constant 0 : i32
    %c0_i32_0 = arith.constant 0 : i32
    %c0_i32_1 = arith.constant 0 : i32
    return %arg0, %c0_i32, %c0_i32_0 : i32, i32, i32
  }
  func.func @transform_6(%arg0: i32) -> (i32, i32, i32) {
    %c0_i32 = arith.constant 0 : i32
    %c0_i32_0 = arith.constant 0 : i32
    %c0_i32_1 = arith.constant 0 : i32
    return %arg0, %c0_i32, %c0_i32_0 : i32, i32, i32
  }
  func.func @transform_7(%arg0: i32) -> (i32, i32, i32) {
    %c0_i32 = arith.constant 0 : i32
    %c0_i32_0 = arith.constant 0 : i32
    %c0_i32_1 = arith.constant 0 : i32
    return %arg0, %c0_i32, %c0_i32_0 : i32, i32, i32
  }
}

</mosaic_0001>

<llo_original>
// kernel: seq_add_forward.2
$region0: #{seq_add_forward.2}
  #allocation0 [shape = 'u32[]', space=smem, size = 0x4, offset = 0x4, fixed_abs, tag = 'smem constant byte address 0x4 - core index']
  #allocation1 [shape = 'u32[144,128]{1,0:T(1,128)}', space=vmem, size = 0x12000, scoped, tag = 'internal scratch']
  %s0 = inlined_call_operand.vmem [shape: f32[2,16,16], index: 0, kind: input, shape index: {}]
  %s1 = inlined_call_operand.vmem [shape: f32[8,16], index: 1, kind: input, shape index: {}]
  %s2 = inlined_call_operand.vmem [shape: f32[8,1], index: 2, kind: input, shape index: {}]
  %s3 = inlined_call_operand.vmem [shape: f32[16,64], index: 3, kind: input, shape index: {}]
  %s4 = inlined_call_operand.vmem [shape: f32[2,8,64], index: 4, kind: output, shape index: {}]
  %s5 = sld [smem:[#allocation0]]
  $region49: #{seq_add_forward.2} parent=0
    _
  %s7 = ssub.s32 1, %s5
  %s8 = scalar_select 0, %s7, %s5
  loop: start=0, step=1, limit=4
  $region2: #{seq_add_forward.2} parent=0 // loop_pre_header
    _
  $region3: #{seq_add_forward.2} parent=0 // loop_header
    %s10 = sphi 0, %s14
    %p11 = scmp.ge.s32.totalorder %s10, 4
    %s20 = sphi 0, %s22
    %s23 = sphi 0, %s20
    %s24 = sphi 0, %s23
    %s40 = sphi 0, %s24
    %s44 = sphi 0, %s44
    %s46 = sphi 0, %s44
    %s47 = sphi 0, %s46
    %s61 = sphi 0, %s47
    %s65 = sphi 0, %s65
    %s67 = sphi 0, %s65
    %s68 = sphi 0, %s67
    %s82 = sphi 0, %s68
    %s86 = sphi 0, %s86
    %s88 = sphi 0, %s86
    %s89 = sphi 0, %s88
    %s103 = sphi 0, %s89
    %s109 = sphi 0, %s111
    %s112 = sphi 0, %s109
    %s113 = sphi 0, %s112
    %s129 = sphi 0, %s113
  $region4: #{seq_add_forward.2} parent=0 // loop_header_branch
    %13 = sbr.rel (%p11) target = $region8
  $region5: #{seq_add_forward.2} parent=0 // loop_body
    %s15 = ssub.s32 %s10, 1
    %s16 = ssub.s32 %s10, 2
    %s17 = sadd.s32 %s10, 1
    %s18 = ssub.s32 %s10, %s17
    %p19 = scmp.eq.s32.totalorder %s18, 0
    %s21 = sadd.s32 %s20, 1
    %s22 = scalar_select %p19, %s20, %s21
    %p25 = pneg %p19
    %p26 = scmp.eq.s32.totalorder %s10, 1
    %p27 = por %p25, %p26
    %p28 = scmp.ne.s32.totalorder %s20, %s23
    %p29 = scmp.eq.s32.totalorder %s10, 0
    %p30 = por %p28, %p29
    %p31 = scmp.ne.s32.totalorder %s20, %s23
    %p32 = scmp.eq.s32.totalorder %s15, 1
    %p33 = por %p31, %p32
    %p34 = scmp.ne.s32.totalorder %s23, %s24
    %p35 = scmp.eq.s32.totalorder %s15, 0
    %p36 = por %p34, %p35
    %p37 = scmp.ne.s32.totalorder %s23, %s24
    %p38 = scmp.eq.s32.totalorder %s16, 1
    %p39 = por %p37, %p38
    %p41 = scmp.ne.s32.totalorder %s24, %s40
    %p42 = scmp.eq.s32.totalorder %s16, 0
    %p43 = por %p41, %p42
    %s45 = sadd.s32 %s44, 1
    %p48 = scmp.eq.s32.totalorder %s10, 1
    %p49 = scmp.ne.s32.totalorder %s44, %s46
    %p50 = scmp.eq.s32.totalorder %s10, 0
    %p51 = por %p49, %p50
    %p52 = scmp.ne.s32.totalorder %s44, %s46
    %p53 = scmp.eq.s32.totalorder %s15, 1
    %p54 = por %p52, %p53
    %p55 = scmp.ne.s32.totalorder %s46, %s47
    %p56 = scmp.eq.s32.totalorder %s15, 0
    %p57 = por %p55, %p56
    %p58 = scmp.ne.s32.totalorder %s46, %s47
    %p59 = scmp.eq.s32.totalorder %s16, 1
    %p60 = por %p58, %p59
    %p62 = scmp.ne.s32.totalorder %s47, %s61
    %p63 = scmp.eq.s32.totalorder %s16, 0
    %p64 = por %p62, %p63
    %s66 = sadd.s32 %s65, 1
    %p69 = scmp.eq.s32.totalorder %s10, 1
    %p70 = scmp.ne.s32.totalorder %s65, %s67
    %p71 = scmp.eq.s32.totalorder %s10, 0
    %p72 = por %p70, %p71
    %p73 = scmp.ne.s32.totalorder %s65, %s67
    %p74 = scmp.eq.s32.totalorder %s15, 1
    %p75 = por %p73, %p74
    %p76 = scmp.ne.s32.totalorder %s67, %s68
    %p77 = scmp.eq.s32.totalorder %s15, 0
    %p78 = por %p76, %p77
    %p79 = scmp.ne.s32.totalorder %s67, %s68
    %p80 = scmp.eq.s32.totalorder %s16, 1
    %p81 = por %p79, %p80
    %p83 = scmp.ne.s32.totalorder %s68, %s82
    %p84 = scmp.eq.s32.totalorder %s16, 0
    %p85 = por %p83, %p84
    %s87 = sadd.s32 %s86, 1
    %p90 = scmp.eq.s32.totalorder %s10, 1
    %p91 = scmp.ne.s32.totalorder %s86, %s88
    %p92 = scmp.eq.s32.totalorder %s10, 0
    %p93 = por %p91, %p92
    %p94 = scmp.ne.s32.totalorder %s86, %s88
    %p95 = scmp.eq.s32.totalorder %s15, 1
    %p96 = por %p94, %p95
    %p97 = scmp.ne.s32.totalorder %s88, %s89
    %p98 = scmp.eq.s32.totalorder %s15, 0
    %p99 = por %p97, %p98
    %p100 = scmp.ne.s32.totalorder %s88, %s89
    %p101 = scmp.eq.s32.totalorder %s16, 1
    %p102 = por %p100, %p101
    %p104 = scmp.ne.s32.totalorder %s89, %s103
    %p105 = scmp.eq.s32.totalorder %s16, 0
    %p106 = por %p104, %p105
    %s107 = ssub.s32 %s10, %s17
    %p108 = scmp.eq.s32.totalorder %s107, 0
    %s110 = sadd.s32 %s109, 1
    %s111 = scalar_select %p108, %s109, %s110
    %p114 = pneg %p108
    %p115 = scmp.eq.s32.totalorder %s10, 1
    %p116 = por %p114, %p115
    %p117 = scmp.ne.s32.totalorder %s109, %s112
    %p118 = scmp.eq.s32.totalorder %s10, 0
    %p119 = por %p117, %p118
    %p120 = scmp.ne.s32.totalorder %s109, %s112
    %p121 = scmp.eq.s32.totalorder %s15, 1
    %p122 = por %p120, %p121
    %p123 = scmp.ne.s32.totalorder %s112, %s113
    %p124 = scmp.eq.s32.totalorder %s15, 0
    %p125 = por %p123, %p124
    %p126 = scmp.ne.s32.totalorder %s112, %s113
    %p127 = scmp.eq.s32.totalorder %s16, 1
    %p128 = por %p126, %p127
    %p130 = scmp.ne.s32.totalorder %s113, %s129
    %p131 = scmp.eq.s32.totalorder %s16, 0
    %p132 = por %p130, %p131
    %p133 = scmp.le.s32.totalorder 1, %s10
    %p134 = scmp.lt.s32.totalorder %s10, 3
    %p135 = pnand %p133, %p134
    %p136 = pneg %p135
    // Predicated region
    $region9: #{seq_add_forward.2} parent=5 // pred_check
      _
    $region10: #{seq_add_forward.2} parent=5 // pred_check_branch
      %138 = sbr.rel (%p135) target = $region12
    $region11: #{seq_add_forward.2} parent=5 // pred_region
      %s139 = ssub.s32 %s10, 1
      // Predicated region
      $region13: #{seq_add_forward.2} parent=11 // pred_check
        %p140 = pneg %p57
      $region14: #{seq_add_forward.2} parent=11 // pred_check_branch
        %142 = sbr.rel (%p140) target = $region16
      $region15: #{seq_add_forward.2} parent=11 // pred_region
        _
      $region16: #{seq_add_forward.2} parent=11 // pred_fallthru
        _
      // Predicated region
      $region17: #{seq_add_forward.2} parent=11 // pred_check
        %p143 = pneg %p78
      $region18: #{seq_add_forward.2} parent=11 // pred_check_branch
        %145 = sbr.rel (%p143) target = $region20
      $region19: #{seq_add_forward.2} parent=11 // pred_region
        _
      $region20: #{seq_add_forward.2} parent=11 // pred_fallthru
        _
      // Predicated region
      $region21: #{seq_add_forward.2} parent=11 // pred_check
        %p146 = pneg %p99
      $region22: #{seq_add_forward.2} parent=11 // pred_check_branch
        %148 = sbr.rel (%p146) target = $region24
      $region23: #{seq_add_forward.2} parent=11 // pred_region
        _
      $region24: #{seq_add_forward.2} parent=11 // pred_fallthru
        _
    $region12: #{seq_add_forward.2} parent=5 // pred_fallthru
      _
    %p149 = scmp.lt.s32.totalorder %s10, 2
    // Predicated region
    $region25: #{seq_add_forward.2} parent=5 // pred_check
      %p150 = pneg %p149
    $region26: #{seq_add_forward.2} parent=5 // pred_check_branch
      %152 = sbr.rel (%p150) target = $region28
    $region27: #{seq_add_forward.2} parent=5 // pred_region
      // Predicated region
      $region29: #{seq_add_forward.2} parent=27 // pred_check
        %p153 = pneg %p30
      $region30: #{seq_add_forward.2} parent=27 // pred_check_branch
        %155 = sbr.rel (%p153) target = $region32
      $region31: #{seq_add_forward.2} parent=27 // pred_region
        %p156 = scmp.lt.s32.totalorder %s10, 1
        %s157 = scalar_select %p156, %s10, 1
        %s158 = smul.addr %s157, 2
        %s159 = smul.addr %s158, 8
        %s160 = scalar_lea.vmem %s0, %s159
      $region32: #{seq_add_forward.2} parent=27 // pred_fallthru
        _
    $region28: #{seq_add_forward.2} parent=5 // pred_fallthru
      _
    %p161 = scmp.le.s32.totalorder 1, %s10
    %p162 = scmp.lt.s32.totalorder %s10, 3
    %p163 = pnand %p161, %p162
    %p164 = pneg %p163
    // Predicated region
    $region33: #{seq_add_forward.2} parent=5 // pred_check
      _
    $region34: #{seq_add_forward.2} parent=5 // pred_check_branch
      %166 = sbr.rel (%p163) target = $region36
    $region35: #{seq_add_forward.2} parent=5 // pred_region
      %s167 = ssub.s32 %s10, 1
      %p168 = scmp.lt.s32.totalorder %s15, 1
      %s169 = scalar_select %p168, %s15, 1
      %s170 = smul.addr %s169, 2
      %s171 = smul.addr %s170, 8
      %s172 = scalar_lea.vmem %s0, %s171
      %p173 = pneg %p36
      %p174 = pneg %p33
      %p175 = pneg %p57
      %p176 = pneg %p54
      %p177 = pneg %p78
      %p178 = pneg %p75
      %p179 = pneg %p99
      %p180 = pneg %p96
      %p181 = pneg %p125
      %p182 = pneg %p122
      %p183 = scmp.lt.s32.totalorder %s15, 1
      %s184 = scalar_select %p183, %s15, 1
      %s185 = smul.addr %s184, 8
      %s186 = scalar_lea.vmem %s4, %s185
      %p187 = scmp.lt.s32.totalorder %s15, 1
      %s188 = scalar_select %p187, %s15, 1
      %s189 = smul.addr %s188, 2
      %s190 = smul.addr %s189, 8
      %s191 = scalar_lea.vmem %s0, %s190
      %p192 = scmp.lt.s32.totalorder %s15, 1
      %s193 = scalar_select %p192, %s15, 1
      %s194 = smul.addr %s193, 8
      %s195 = scalar_lea.vmem %s4, %s194
      %v196 = vld [vmem:[%s191] sm:$0xff]
      %v197 = vld [vmem:[%s191 + $0x8] sm:$0xff]
      %v198 = vld [vmem:[%s1] sm:$0xff]
      %v199 = vld [vmem:[%s2] sm:$0xff]
      %201 = vset.pattern.permute.xlu0 0
      %202 = vperm.xlu0 %201, %v199
      %v203 = vpop.permute.xlu0 %202
      %vm205 = vcmask 130048
      %v207 = vsel %vm205, %v198, 0
      %209 = vmatprep.subr.mxu0 0.0
      %210 = vmatpush1.msra.mxu0 0.0
      %211 = vmatprep.subr.mxu0 0.0
      %212 = vmatpush1.msra.mxu0 0.0
      %213 = vmatprep.subr.mxu0 0.0
      %214 = vmatpush1.msra.mxu0 0.0
      %215 = vmatprep.subr.mxu0 0.0
      %216 = vmatpush1.msra.mxu0 0.0
      %217 = vmatprep.subr.mxu0 0.0
      %218 = vmatpush1.msra.mxu0 0.0
      %219 = vmatprep.subr.mxu0 0.0
      %220 = vmatpush1.msra.mxu0 0.0
      %221 = vmatprep.subr.mxu0 0.0
      %222 = vmatpush1.msra.mxu0 0.0
      %223 = vmatprep.subr.mxu0 0.0
      %224 = vmatpush1.msra.mxu0 0.0
      %225 = vmatprep.subr.mxu0 0.0
      %226 = vmatpush1.msra.mxu0 0.0
      %227 = vmatprep.subr.mxu0 0.0
      %228 = vmatpush1.msra.mxu0 0.0
      %229 = vmatprep.subr.mxu0 0.0
      %230 = vmatpush1.msra.mxu0 0.0
      %231 = vmatprep.subr.mxu0 0.0
      %232 = vmatpush1.msra.mxu0 0.0
      %233 = vmatprep.subr.mxu0 0.0
      %234 = vmatpush1.msra.mxu0 0.0
      %235 = vmatprep.subr.mxu0 0.0
      %236 = vmatpush1.msra.mxu0 0.0
      %237 = vmatprep.subr.mxu0 0.0
      %238 = vmatpush1.msra.mxu0 %v197
      %239 = vmatprep.subr.mxu0 0.0
      %240 = vmatpush1.msra.mxu0 %v196
      %241 = vmatprep.subr.mxu0 0.0
      %242 = vmatpush2.msra.mxu0 0.0
      %243 = vmatprep.subr.mxu0 0.0
      %244 = vmatpush2.msra.mxu0 0.0
      %245 = vmatprep.subr.mxu0 0.0
      %246 = vmatpush2.msra.mxu0 0.0
      %247 = vmatprep.subr.mxu0 0.0
      %248 = vmatpush2.msra.mxu0 0.0
      %249 = vmatprep.subr.mxu0 0.0
      %250 = vmatpush2.msra.mxu0 0.0
      %251 = vmatprep.subr.mxu0 0.0
      %252 = vmatpush2.msra.mxu0 0.0
      %253 = vmatprep.subr.mxu0 0.0
      %254 = vmatpush2.msra.mxu0 0.0
      %255 = vmatprep.subr.mxu0 0.0
      %256 = vmatpush2.msra.mxu0 0.0
      %257 = vmatprep.subr.mxu0 0.0
      %258 = vmatpush2.msra.mxu0 0.0
      %259 = vmatprep.subr.mxu0 0.0
      %260 = vmatpush2.msra.mxu0 0.0
      %261 = vmatprep.subr.mxu0 0.0
      %262 = vmatpush2.msra.mxu0 0.0
      %263 = vmatprep.subr.mxu0 0.0
      %264 = vmatpush2.msra.mxu0 0.0
      %265 = vmatprep.subr.mxu0 0.0
      %266 = vmatpush2.msra.mxu0 0.0
      %267 = vmatprep.subr.mxu0 0.0
      %268 = vmatpush2.msra.mxu0 0.0
      %269 = vmatprep.subr.mxu0 0.0
      %270 = vmatpush2.msra.mxu0 0.0
      %271 = vmatprep.subr.mxu0 0.0
      %272 = vmatpush2.msra.mxu0 0.0
      %273 = vmatprep.mubr.f32.mxu0 0.0
      %274 = vmatmul.mubr.f32.gmra.mxu0 %v207
      %v275 = vpop.f32.mrf.mxu0
      %v276 = vadd.f32 %v203, %v275
      %v277 = vpop.f32.mrf.mxu0
      %278 = vdwg.mxu0
      %v279 = vld [vmem:[%s3] sm:$0xff]
      %v280 = vld [vmem:[%s3 + $0x8] sm:$0xff]
      %v282 = vsel %vm205, %v276, 0
      %284 = vmatprep.subr.mxu0 0.0
      %285 = vmatpush1.msra.mxu0 0.0
      %286 = vmatprep.subr.mxu0 0.0
      %287 = vmatpush1.msra.mxu0 0.0
      %288 = vmatprep.subr.mxu0 0.0
      %289 = vmatpush1.msra.mxu0 0.0
      %290 = vmatprep.subr.mxu0 0.0
      %291 = vmatpush1.msra.mxu0 0.0
      %292 = vmatprep.subr.mxu0 0.0
      %293 = vmatpush1.msra.mxu0 0.0
      %294 = vmatprep.subr.mxu0 0.0
      %295 = vmatpush1.msra.mxu0 0.0
      %296 = vmatprep.subr.mxu0 0.0
      %297 = vmatpush1.msra.mxu0 0.0
      %298 = vmatprep.subr.mxu0 0.0
      %299 = vmatpush1.msra.mxu0 0.0
      %300 = vmatprep.subr.mxu0 0.0
      %301 = vmatpush1.msra.mxu0 0.0
      %302 = vmatprep.subr.mxu0 0.0
      %303 = vmatpush1.msra.mxu0 0.0
      %304 = vmatprep.subr.mxu0 0.0
      %305 = vmatpush1.msra.mxu0 0.0
      %306 = vmatprep.subr.mxu0 0.0
      %307 = vmatpush1.msra.mxu0 0.0
      %308 = vmatprep.subr.mxu0 0.0
      %309 = vmatpush1.msra.mxu0 0.0
      %310 = vmatprep.subr.mxu0 0.0
      %311 = vmatpush1.msra.mxu0 0.0
      %312 = vmatprep.subr.mxu0 0.0
      %313 = vmatpush1.msra.mxu0 %v280
      %314 = vmatprep.subr.mxu0 0.0
      %315 = vmatpush1.msra.mxu0 %v279
      %316 = vmatprep.subr.mxu0 0.0
      %317 = vmatpush2.msra.mxu0 0.0
      %318 = vmatprep.subr.mxu0 0.0
      %319 = vmatpush2.msra.mxu0 0.0
      %320 = vmatprep.subr.mxu0 0.0
      %321 = vmatpush2.msra.mxu0 0.0
      %322 = vmatprep.subr.mxu0 0.0
      %323 = vmatpush2.msra.mxu0 0.0
      %324 = vmatprep.subr.mxu0 0.0
      %325 = vmatpush2.msra.mxu0 0.0
      %326 = vmatprep.subr.mxu0 0.0
      %327 = vmatpush2.msra.mxu0 0.0
      %328 = vmatprep.subr.mxu0 0.0
      %329 = vmatpush2.msra.mxu0 0.0
      %330 = vmatprep.subr.mxu0 0.0
      %331 = vmatpush2.msra.mxu0 0.0
      %332 = vmatprep.subr.mxu0 0.0
      %333 = vmatpush2.msra.mxu0 0.0
      %334 = vmatprep.subr.mxu0 0.0
      %335 = vmatpush2.msra.mxu0 0.0
      %336 = vmatprep.subr.mxu0 0.0
      %337 = vmatpush2.msra.mxu0 0.0
      %338 = vmatprep.subr.mxu0 0.0
      %339 = vmatpush2.msra.mxu0 0.0
      %340 = vmatprep.subr.mxu0 0.0
      %341 = vmatpush2.msra.mxu0 0.0
      %342 = vmatprep.subr.mxu0 0.0
      %343 = vmatpush2.msra.mxu0 0.0
      %344 = vmatprep.subr.mxu0 0.0
      %345 = vmatpush2.msra.mxu0 0.0
      %346 = vmatprep.subr.mxu0 0.0
      %347 = vmatpush2.msra.mxu0 0.0
      %348 = vmatprep.mubr.f32.mxu0 0.0
      %349 = vmatmul.mubr.f32.gmra.mxu0 %v282
      %v350 = vpop.f32.mrf.mxu0
      %v351 = vadd.f32 0.0, %v350
      %v352 = vpop.f32.mrf.mxu0
      %353 = vdwg.mxu0
      %vm354 = vcmask 523264
      %355 = vst.msk [vmem:[%s195] sm:$0xff] %vm354, %v351
      %p356 = scmp.lt.s32.totalorder %s15, 1
      %s357 = scalar_select %p356, %s15, 1
      %s358 = smul.addr %s357, 8
      %s359 = scalar_lea.vmem %s4, %s358
      // Predicated region
      $region37: #{seq_add_forward.2} parent=35 // pred_check
        %p360 = pneg %p122
      $region38: #{seq_add_forward.2} parent=35 // pred_check_branch
        %362 = sbr.rel (%p360) target = $region40
      $region39: #{seq_add_forward.2} parent=35 // pred_region
        _
      $region40: #{seq_add_forward.2} parent=35 // pred_fallthru
        _
    $region36: #{seq_add_forward.2} parent=5 // pred_fallthru
      _
    %p363 = scmp.le.s32.totalorder 2, %s10
    // Predicated region
    $region41: #{seq_add_forward.2} parent=5 // pred_check
      %p364 = pneg %p363
    $region42: #{seq_add_forward.2} parent=5 // pred_check_branch
      %366 = sbr.rel (%p364) target = $region44
    $region43: #{seq_add_forward.2} parent=5 // pred_region
      %s367 = ssub.s32 %s10, 2
      // Predicated region
      $region45: #{seq_add_forward.2} parent=43 // pred_check
        %p368 = pneg %p128
      $region46: #{seq_add_forward.2} parent=43 // pred_check_branch
        %370 = sbr.rel (%p368) target = $region48
      $region47: #{seq_add_forward.2} parent=43 // pred_region
        %p371 = scmp.lt.s32.totalorder %s16, 1
        %s372 = scalar_select %p371, %s16, 1
        %s373 = smul.addr %s372, 8
        %s374 = scalar_lea.vmem %s4, %s373
      $region48: #{seq_add_forward.2} parent=43 // pred_fallthru
        _
    $region44: #{seq_add_forward.2} parent=5 // pred_fallthru
      _
  $region6: #{seq_add_forward.2} parent=0 // loop_footer
    %s14 = sadd.s32 1, %s10
  $region7: #{seq_add_forward.2} parent=0 // loop_footer_branch
    %9 = sbr.rel target = $region3
  $region8: #{seq_add_forward.2} parent=0 // loop_exit
    _

// kernel: seq_add_forward.3
$region0: #{seq_add_forward.3}
  #allocation0 [shape = 'u32[]', space=smem, size = 0x4, offset = 0x4, fixed_abs, tag = 'smem constant byte address 0x4 - core index']
  #allocation1 [shape = 'u32[144,128]{1,0:T(1,128)}', space=vmem, size = 0x12000, scoped, tag = 'internal scratch']
  %s0 = inlined_call_operand.vmem [shape: f32[2,8,64], index: 0, kind: input, shape index: {}]
  %s1 = inlined_call_operand.vmem [shape: f32[2,8,64], index: 1, kind: input, shape index: {}]
  %s2 = inlined_call_operand.vmem [shape: f32[4,8], index: 2, kind: input, shape index: {}]
  %s3 = inlined_call_operand.vmem [shape: f32[4,1], index: 3, kind: input, shape index: {}]
  %s4 = inlined_call_operand.vmem [shape: f32[64,256], index: 4, kind: input, shape index: {}]
  %s5 = inlined_call_operand.vmem [shape: f32[2,4,256], index: 5, kind: input, shape index: {}]
  %s6 = inlined_call_operand.vmem [shape: f32[2,4,256], index: 6, kind: output, shape index: {0}]
  %s7 = inlined_call_operand.vmem [shape: f32[2,4,256], index: 7, kind: output, shape index: {1}]
  %8 = xla_tuple %s6, %s7
  %s9 = sld [smem:[#allocation0]]
  $region65: #{seq_add_forward.3} parent=0
    _
  %s11 = ssub.s32 1, %s9
  %s12 = scalar_select 0, %s11, %s9
  loop: start=0, step=1, limit=4
  $region2: #{seq_add_forward.3} parent=0 // loop_pre_header
    _
  $region3: #{seq_add_forward.3} parent=0 // loop_header
    %s14 = sphi 0, %s18
    %p15 = scmp.ge.s32.totalorder %s14, 4
    %s24 = sphi 0, %s26
    %s27 = sphi 0, %s24
    %s28 = sphi 0, %s27
    %s44 = sphi 0, %s28
    %s50 = sphi 0, %s52
    %s53 = sphi 0, %s50
    %s54 = sphi 0, %s53
    %s70 = sphi 0, %s54
    %s74 = sphi 0, %s74
    %s76 = sphi 0, %s74
    %s77 = sphi 0, %s76
    %s91 = sphi 0, %s77
    %s95 = sphi 0, %s95
    %s97 = sphi 0, %s95
    %s98 = sphi 0, %s97
    %s112 = sphi 0, %s98
    %s116 = sphi 0, %s116
    %s118 = sphi 0, %s116
    %s119 = sphi 0, %s118
    %s133 = sphi 0, %s119
    %s139 = sphi 0, %s141
    %s142 = sphi 0, %s139
    %s143 = sphi 0, %s142
    %s159 = sphi 0, %s143
    %s165 = sphi 0, %s167
    %s168 = sphi 0, %s165
    %s169 = sphi 0, %s168
    %s185 = sphi 0, %s169
    %s191 = sphi 0, %s193
    %s194 = sphi 0, %s191
    %s195 = sphi 0, %s194
    %s211 = sphi 0, %s195
  $region4: #{seq_add_forward.3} parent=0 // loop_header_branch
    %17 = sbr.rel (%p15) target = $region8
  $region5: #{seq_add_forward.3} parent=0 // loop_body
    %s19 = ssub.s32 %s14, 1
    %s20 = ssub.s32 %s14, 2
    %s21 = sadd.s32 %s14, 1
    %s22 = ssub.s32 %s14, %s21
    %p23 = scmp.eq.s32.totalorder %s22, 0
    %s25 = sadd.s32 %s24, 1
    %s26 = scalar_select %p23, %s24, %s25
    %p29 = pneg %p23
    %p30 = scmp.eq.s32.totalorder %s14, 1
    %p31 = por %p29, %p30
    %p32 = scmp.ne.s32.totalorder %s24, %s27
    %p33 = scmp.eq.s32.totalorder %s14, 0
    %p34 = por %p32, %p33
    %p35 = scmp.ne.s32.totalorder %s24, %s27
    %p36 = scmp.eq.s32.totalorder %s19, 1
    %p37 = por %p35, %p36
    %p38 = scmp.ne.s32.totalorder %s27, %s28
    %p39 = scmp.eq.s32.totalorder %s19, 0
    %p40 = por %p38, %p39
    %p41 = scmp.ne.s32.totalorder %s27, %s28
    %p42 = scmp.eq.s32.totalorder %s20, 1
    %p43 = por %p41, %p42
    %p45 = scmp.ne.s32.totalorder %s28, %s44
    %p46 = scmp.eq.s32.totalorder %s20, 0
    %p47 = por %p45, %p46
    %s48 = ssub.s32 %s14, %s21
    %p49 = scmp.eq.s32.totalorder %s48, 0
    %s51 = sadd.s32 %s50, 1
    %s52 = scalar_select %p49, %s50, %s51
    %p55 = pneg %p49
    %p56 = scmp.eq.s32.totalorder %s14, 1
    %p57 = por %p55, %p56
    %p58 = scmp.ne.s32.totalorder %s50, %s53
    %p59 = scmp.eq.s32.totalorder %s14, 0
    %p60 = por %p58, %p59
    %p61 = scmp.ne.s32.totalorder %s50, %s53
    %p62 = scmp.eq.s32.totalorder %s19, 1
    %p63 = por %p61, %p62
    %p64 = scmp.ne.s32.totalorder %s53, %s54
    %p65 = scmp.eq.s32.totalorder %s19, 0
    %p66 = por %p64, %p65
    %p67 = scmp.ne.s32.totalorder %s53, %s54
    %p68 = scmp.eq.s32.totalorder %s20, 1
    %p69 = por %p67, %p68
    %p71 = scmp.ne.s32.totalorder %s54, %s70
    %p72 = scmp.eq.s32.totalorder %s20, 0
    %p73 = por %p71, %p72
    %s75 = sadd.s32 %s74, 1
    %p78 = scmp.eq.s32.totalorder %s14, 1
    %p79 = scmp.ne.s32.totalorder %s74, %s76
    %p80 = scmp.eq.s32.totalorder %s14, 0
    %p81 = por %p79, %p80
    %p82 = scmp.ne.s32.totalorder %s74, %s76
    %p83 = scmp.eq.s32.totalorder %s19, 1
    %p84 = por %p82, %p83
    %p85 = scmp.ne.s32.totalorder %s76, %s77
    %p86 = scmp.eq.s32.totalorder %s19, 0
    %p87 = por %p85, %p86
    %p88 = scmp.ne.s32.totalorder %s76, %s77
    %p89 = scmp.eq.s32.totalorder %s20, 1
    %p90 = por %p88, %p89
    %p92 = scmp.ne.s32.totalorder %s77, %s91
    %p93 = scmp.eq.s32.totalorder %s20, 0
    %p94 = por %p92, %p93
    %s96 = sadd.s32 %s95, 1
    %p99 = scmp.eq.s32.totalorder %s14, 1
    %p100 = scmp.ne.s32.totalorder %s95, %s97
    %p101 = scmp.eq.s32.totalorder %s14, 0
    %p102 = por %p100, %p101
    %p103 = scmp.ne.s32.totalorder %s95, %s97
    %p104 = scmp.eq.s32.totalorder %s19, 1
    %p105 = por %p103, %p104
    %p106 = scmp.ne.s32.totalorder %s97, %s98
    %p107 = scmp.eq.s32.totalorder %s19, 0
    %p108 = por %p106, %p107
    %p109 = scmp.ne.s32.totalorder %s97, %s98
    %p110 = scmp.eq.s32.totalorder %s20, 1
    %p111 = por %p109, %p110
    %p113 = scmp.ne.s32.totalorder %s98, %s112
    %p114 = scmp.eq.s32.totalorder %s20, 0
    %p115 = por %p113, %p114
    %s117 = sadd.s32 %s116, 1
    %p120 = scmp.eq.s32.totalorder %s14, 1
    %p121 = scmp.ne.s32.totalorder %s116, %s118
    %p122 = scmp.eq.s32.totalorder %s14, 0
    %p123 = por %p121, %p122
    %p124 = scmp.ne.s32.totalorder %s116, %s118
    %p125 = scmp.eq.s32.totalorder %s19, 1
    %p126 = por %p124, %p125
    %p127 = scmp.ne.s32.totalorder %s118, %s119
    %p128 = scmp.eq.s32.totalorder %s19, 0
    %p129 = por %p127, %p128
    %p130 = scmp.ne.s32.totalorder %s118, %s119
    %p131 = scmp.eq.s32.totalorder %s20, 1
    %p132 = por %p130, %p131
    %p134 = scmp.ne.s32.totalorder %s119, %s133
    %p135 = scmp.eq.s32.totalorder %s20, 0
    %p136 = por %p134, %p135
    %s137 = ssub.s32 %s14, %s21
    %p138 = scmp.eq.s32.totalorder %s137, 0
    %s140 = sadd.s32 %s139, 1
    %s141 = scalar_select %p138, %s139, %s140
    %p144 = pneg %p138
    %p145 = scmp.eq.s32.totalorder %s14, 1
    %p146 = por %p144, %p145
    %p147 = scmp.ne.s32.totalorder %s139, %s142
    %p148 = scmp.eq.s32.totalorder %s14, 0
    %p149 = por %p147, %p148
    %p150 = scmp.ne.s32.totalorder %s139, %s142
    %p151 = scmp.eq.s32.totalorder %s19, 1
    %p152 = por %p150, %p151
    %p153 = scmp.ne.s32.totalorder %s142, %s143
    %p154 = scmp.eq.s32.totalorder %s19, 0
    %p155 = por %p153, %p154
    %p156 = scmp.ne.s32.totalorder %s142, %s143
    %p157 = scmp.eq.s32.totalorder %s20, 1
    %p158 = por %p156, %p157
    %p160 = scmp.ne.s32.totalorder %s143, %s159
    %p161 = scmp.eq.s32.totalorder %s20, 0
    %p162 = por %p160, %p161
    %s163 = ssub.s32 %s14, %s21
    %p164 = scmp.eq.s32.totalorder %s163, 0
    %s166 = sadd.s32 %s165, 1
    %s167 = scalar_select %p164, %s165, %s166
    %p170 = pneg %p164
    %p171 = scmp.eq.s32.totalorder %s14, 1
    %p172 = por %p170, %p171
    %p173 = scmp.ne.s32.totalorder %s165, %s168
    %p174 = scmp.eq.s32.totalorder %s14, 0
    %p175 = por %p173, %p174
    %p176 = scmp.ne.s32.totalorder %s165, %s168
    %p177 = scmp.eq.s32.totalorder %s19, 1
    %p178 = por %p176, %p177
    %p179 = scmp.ne.s32.totalorder %s168, %s169
    %p180 = scmp.eq.s32.totalorder %s19, 0
    %p181 = por %p179, %p180
    %p182 = scmp.ne.s32.totalorder %s168, %s169
    %p183 = scmp.eq.s32.totalorder %s20, 1
    %p184 = por %p182, %p183
    %p186 = scmp.ne.s32.totalorder %s169, %s185
    %p187 = scmp.eq.s32.totalorder %s20, 0
    %p188 = por %p186, %p187
    %s189 = ssub.s32 %s14, %s21
    %p190 = scmp.eq.s32.totalorder %s189, 0
    %s192 = sadd.s32 %s191, 1
    %s193 = scalar_select %p190, %s191, %s192
    %p196 = pneg %p190
    %p197 = scmp.eq.s32.totalorder %s14, 1
    %p198 = por %p196, %p197
    %p199 = scmp.ne.s32.totalorder %s191, %s194
    %p200 = scmp.eq.s32.totalorder %s14, 0
    %p201 = por %p199, %p200
    %p202 = scmp.ne.s32.totalorder %s191, %s194
    %p203 = scmp.eq.s32.totalorder %s19, 1
    %p204 = por %p202, %p203
    %p205 = scmp.ne.s32.totalorder %s194, %s195
    %p206 = scmp.eq.s32.totalorder %s19, 0
    %p207 = por %p205, %p206
    %p208 = scmp.ne.s32.totalorder %s194, %s195
    %p209 = scmp.eq.s32.totalorder %s20, 1
    %p210 = por %p208, %p209
    %p212 = scmp.ne.s32.totalorder %s195, %s211
    %p213 = scmp.eq.s32.totalorder %s20, 0
    %p214 = por %p212, %p213
    %p215 = scmp.le.s32.totalorder 1, %s14
    %p216 = scmp.lt.s32.totalorder %s14, 3
    %p217 = pnand %p215, %p216
    %p218 = pneg %p217
    // Predicated region
    $region9: #{seq_add_forward.3} parent=5 // pred_check
      _
    $region10: #{seq_add_forward.3} parent=5 // pred_check_branch
      %220 = sbr.rel (%p217) target = $region12
    $region11: #{seq_add_forward.3} parent=5 // pred_region
      %s221 = ssub.s32 %s14, 1
      // Predicated region
      $region13: #{seq_add_forward.3} parent=11 // pred_check
        %p222 = pneg %p87
      $region14: #{seq_add_forward.3} parent=11 // pred_check_branch
        %224 = sbr.rel (%p222) target = $region16
      $region15: #{seq_add_forward.3} parent=11 // pred_region
        _
      $region16: #{seq_add_forward.3} parent=11 // pred_fallthru
        _
      // Predicated region
      $region17: #{seq_add_forward.3} parent=11 // pred_check
        %p225 = pneg %p108
      $region18: #{seq_add_forward.3} parent=11 // pred_check_branch
        %227 = sbr.rel (%p225) target = $region20
      $region19: #{seq_add_forward.3} parent=11 // pred_region
        _
      $region20: #{seq_add_forward.3} parent=11 // pred_fallthru
        _
      // Predicated region
      $region21: #{seq_add_forward.3} parent=11 // pred_check
        %p228 = pneg %p129
      $region22: #{seq_add_forward.3} parent=11 // pred_check_branch
        %230 = sbr.rel (%p228) target = $region24
      $region23: #{seq_add_forward.3} parent=11 // pred_region
        _
      $region24: #{seq_add_forward.3} parent=11 // pred_fallthru
        _
    $region12: #{seq_add_forward.3} parent=5 // pred_fallthru
      _
    %p231 = scmp.lt.s32.totalorder %s14, 2
    // Predicated region
    $region25: #{seq_add_forward.3} parent=5 // pred_check
      %p232 = pneg %p231
    $region26: #{seq_add_forward.3} parent=5 // pred_check_branch
      %234 = sbr.rel (%p232) target = $region28
    $region27: #{seq_add_forward.3} parent=5 // pred_region
      // Predicated region
      $region29: #{seq_add_forward.3} parent=27 // pred_check
        %p235 = pneg %p34
      $region30: #{seq_add_forward.3} parent=27 // pred_check_branch
        %237 = sbr.rel (%p235) target = $region32
      $region31: #{seq_add_forward.3} parent=27 // pred_region
        %p238 = scmp.lt.s32.totalorder %s14, 1
        %s239 = scalar_select %p238, %s14, 1
        %s240 = smul.addr %s239, 8
        %s241 = scalar_lea.vmem %s0, %s240
      $region32: #{seq_add_forward.3} parent=27 // pred_fallthru
        _
      // Predicated region
      $region33: #{seq_add_forward.3} parent=27 // pred_check
        %p242 = pneg %p60
      $region34: #{seq_add_forward.3} parent=27 // pred_check_branch
        %244 = sbr.rel (%p242) target = $region36
      $region35: #{seq_add_forward.3} parent=27 // pred_region
        %p245 = scmp.lt.s32.totalorder %s14, 1
        %s246 = scalar_select %p245, %s14, 1
        %s247 = smul.addr %s246, 8
        %s248 = scalar_lea.vmem %s1, %s247
      $region36: #{seq_add_forward.3} parent=27 // pred_fallthru
        _
      // Predicated region
      $region37: #{seq_add_forward.3} parent=27 // pred_check
        %p249 = pneg %p149
      $region38: #{seq_add_forward.3} parent=27 // pred_check_branch
        %251 = sbr.rel (%p249) target = $region40
      $region39: #{seq_add_forward.3} parent=27 // pred_region
        %p252 = scmp.lt.s32.totalorder %s14, 1
        %s253 = scalar_select %p252, %s14, 1
        %s254 = smul.addr %s253, 2
        %s255 = smul.addr %s254, 4
        %s256 = scalar_lea.vmem %s5, %s255
      $region40: #{seq_add_forward.3} parent=27 // pred_fallthru
        _
    $region28: #{seq_add_forward.3} parent=5 // pred_fallthru
      _
    %p257 = scmp.le.s32.totalorder 1, %s14
    %p258 = scmp.lt.s32.totalorder %s14, 3
    %p259 = pnand %p257, %p258
    %p260 = pneg %p259
    // Predicated region
    $region41: #{seq_add_forward.3} parent=5 // pred_check
      _
    $region42: #{seq_add_forward.3} parent=5 // pred_check_branch
      %262 = sbr.rel (%p259) target = $region44
    $region43: #{seq_add_forward.3} parent=5 // pred_region
      %s263 = ssub.s32 %s14, 1
      %p264 = scmp.lt.s32.totalorder %s19, 1
      %s265 = scalar_select %p264, %s19, 1
      %s266 = smul.addr %s265, 8
      %s267 = scalar_lea.vmem %s0, %s266
      %p268 = pneg %p40
      %p269 = pneg %p37
      %p270 = scmp.lt.s32.totalorder %s19, 1
      %s271 = scalar_select %p270, %s19, 1
      %s272 = smul.addr %s271, 8
      %s273 = scalar_lea.vmem %s1, %s272
      %p274 = pneg %p66
      %p275 = pneg %p63
      %p276 = pneg %p87
      %p277 = pneg %p84
      %p278 = pneg %p108
      %p279 = pneg %p105
      %p280 = pneg %p129
      %p281 = pneg %p126
      %p282 = scmp.lt.s32.totalorder %s19, 1
      %s283 = scalar_select %p282, %s19, 1
      %s284 = smul.addr %s283, 2
      %s285 = smul.addr %s284, 4
      %s286 = scalar_lea.vmem %s5, %s285
      %p287 = pneg %p155
      %p288 = pneg %p152
      %p289 = pneg %p181
      %p290 = pneg %p178
      %p291 = scmp.lt.s32.totalorder %s19, 1
      %s292 = scalar_select %p291, %s19, 1
      %s293 = smul.addr %s292, 2
      %s294 = smul.addr %s293, 4
      %s295 = scalar_lea.vmem %s6, %s294
      %p296 = pneg %p207
      %p297 = pneg %p204
      %p298 = scmp.lt.s32.totalorder %s19, 1
      %s299 = scalar_select %p298, %s19, 1
      %s300 = smul.addr %s299, 2
      %s301 = smul.addr %s300, 4
      %s302 = scalar_lea.vmem %s7, %s301
      %p303 = scmp.lt.s32.totalorder %s19, 1
      %s304 = scalar_select %p303, %s19, 1
      %s305 = smul.addr %s304, 8
      %s306 = scalar_lea.vmem %s0, %s305
      %p307 = scmp.lt.s32.totalorder %s19, 1
      %s308 = scalar_select %p307, %s19, 1
      %s309 = smul.addr %s308, 8
      %s310 = scalar_lea.vmem %s1, %s309
      %p311 = scmp.lt.s32.totalorder %s19, 1
      %s312 = scalar_select %p311, %s19, 1
      %s313 = smul.addr %s312, 2
      %s314 = smul.addr %s313, 4
      %s315 = scalar_lea.vmem %s5, %s314
      %p316 = scmp.lt.s32.totalorder %s19, 1
      %s317 = scalar_select %p316, %s19, 1
      %s318 = smul.addr %s317, 2
      %s319 = smul.addr %s318, 4
      %s320 = scalar_lea.vmem %s6, %s319
      %p321 = scmp.lt.s32.totalorder %s19, 1
      %s322 = scalar_select %p321, %s19, 1
      %s323 = smul.addr %s322, 2
      %s324 = smul.addr %s323, 4
      %s325 = scalar_lea.vmem %s7, %s324
      %v326 = vld [vmem:[%s306] sm:$0xff]
      %v327 = vld [vmem:[%s310] sm:$0xff]
      %v328 = vadd.f32 %v326, %v327
      %v329 = vld [vmem:[%s2] sm:$0xf]
      %v330 = vld [vmem:[%s3] sm:$0xf]
      %332 = vset.pattern.permute.xlu0 0
      %333 = vperm.xlu0 %332, %v330
      %v334 = vpop.permute.xlu0 %333
      %vm336 = vcmask 64512
      %v338 = vsel %vm336, %v329, 0
      %340 = vmatprep.subr.mxu0 0.0
      %341 = vmatpush1.msra.mxu0 0.0
      %342 = vmatprep.subr.mxu0 0.0
      %343 = vmatpush1.msra.mxu0 0.0
      %344 = vmatprep.subr.mxu0 0.0
      %345 = vmatpush1.msra.mxu0 0.0
      %346 = vmatprep.subr.mxu0 0.0
      %347 = vmatpush1.msra.mxu0 0.0
      %348 = vmatprep.subr.mxu0 0.0
      %349 = vmatpush1.msra.mxu0 0.0
      %350 = vmatprep.subr.mxu0 0.0
      %351 = vmatpush1.msra.mxu0 0.0
      %352 = vmatprep.subr.mxu0 0.0
      %353 = vmatpush1.msra.mxu0 0.0
      %354 = vmatprep.subr.mxu0 0.0
      %355 = vmatpush1.msra.mxu0 0.0
      %356 = vmatprep.subr.mxu0 0.0
      %357 = vmatpush1.msra.mxu0 0.0
      %358 = vmatprep.subr.mxu0 0.0
      %359 = vmatpush1.msra.mxu0 0.0
      %360 = vmatprep.subr.mxu0 0.0
      %361 = vmatpush1.msra.mxu0 0.0
      %362 = vmatprep.subr.mxu0 0.0
      %363 = vmatpush1.msra.mxu0 0.0
      %364 = vmatprep.subr.mxu0 0.0
      %365 = vmatpush1.msra.mxu0 0.0
      %366 = vmatprep.subr.mxu0 0.0
      %367 = vmatpush1.msra.mxu0 0.0
      %368 = vmatprep.subr.mxu0 0.0
      %369 = vmatpush1.msra.mxu0 0.0
      %370 = vmatprep.subr.mxu0 0.0
      %371 = vmatpush1.msra.mxu0 %v328
      %372 = vmatprep.subr.mxu0 0.0
      %373 = vmatpush2.msra.mxu0 0.0
      %374 = vmatprep.subr.mxu0 0.0
      %375 = vmatpush2.msra.mxu0 0.0
      %376 = vmatprep.subr.mxu0 0.0
      %377 = vmatpush2.msra.mxu0 0.0
      %378 = vmatprep.subr.mxu0 0.0
      %379 = vmatpush2.msra.mxu0 0.0
      %380 = vmatprep.subr.mxu0 0.0
      %381 = vmatpush2.msra.mxu0 0.0
      %382 = vmatprep.subr.mxu0 0.0
      %383 = vmatpush2.msra.mxu0 0.0
      %384 = vmatprep.subr.mxu0 0.0
      %385 = vmatpush2.msra.mxu0 0.0
      %386 = vmatprep.subr.mxu0 0.0
      %387 = vmatpush2.msra.mxu0 0.0
      %388 = vmatprep.subr.mxu0 0.0
      %389 = vmatpush2.msra.mxu0 0.0
      %390 = vmatprep.subr.mxu0 0.0
      %391 = vmatpush2.msra.mxu0 0.0
      %392 = vmatprep.subr.mxu0 0.0
      %393 = vmatpush2.msra.mxu0 0.0
      %394 = vmatprep.subr.mxu0 0.0
      %395 = vmatpush2.msra.mxu0 0.0
      %396 = vmatprep.subr.mxu0 0.0
      %397 = vmatpush2.msra.mxu0 0.0
      %398 = vmatprep.subr.mxu0 0.0
      %399 = vmatpush2.msra.mxu0 0.0
      %400 = vmatprep.subr.mxu0 0.0
      %401 = vmatpush2.msra.mxu0 0.0
      %402 = vmatprep.subr.mxu0 0.0
      %403 = vmatpush2.msra.mxu0 0.0
      %404 = vmatprep.mubr.f32.mxu0 0.0
      %405 = vmatmul.mubr.f32.gmra.mxu0 %v338
      %v406 = vpop.f32.mrf.mxu0
      %v407 = vadd.f32 %v334, %v406
      %v408 = vpop.f32.mrf.mxu0
      %409 = vdwg.mxu0
      %v410 = vld [vmem:[%s4] sm:$0xff]
      %v411 = vld [vmem:[%s4 + $0x8] sm:$0xff]
      %v412 = vld [vmem:[%s4 + $0x10] sm:$0xff]
      %v413 = vld [vmem:[%s4 + $0x18] sm:$0xff]
      %v414 = vld [vmem:[%s4 + $0x20] sm:$0xff]
      %v415 = vld [vmem:[%s4 + $0x28] sm:$0xff]
      %v416 = vld [vmem:[%s4 + $0x30] sm:$0xff]
      %v417 = vld [vmem:[%s4 + $0x38] sm:$0xff]
      %v418 = vld [vmem:[%s4 + $0x40] sm:$0xff]
      %v419 = vld [vmem:[%s4 + $0x48] sm:$0xff]
      %v420 = vld [vmem:[%s4 + $0x50] sm:$0xff]
      %v421 = vld [vmem:[%s4 + $0x58] sm:$0xff]
      %v422 = vld [vmem:[%s4 + $0x60] sm:$0xff]
      %v423 = vld [vmem:[%s4 + $0x68] sm:$0xff]
      %v424 = vld [vmem:[%s4 + $0x70] sm:$0xff]
      %v425 = vld [vmem:[%s4 + $0x78] sm:$0xff]
      %vm426 = vcmask 523264
      %v428 = vsel %vm426, %v407, 0
      %430 = vmatprep.subr.mxu0 0.0
      %431 = vmatpush1.msra.mxu0 0.0
      %432 = vmatprep.subr.mxu0 0.0
      %433 = vmatpush1.msra.mxu0 0.0
      %434 = vmatprep.subr.mxu0 0.0
      %435 = vmatpush1.msra.mxu0 0.0
      %436 = vmatprep.subr.mxu0 0.0
      %437 = vmatpush1.msra.mxu0 0.0
      %438 = vmatprep.subr.mxu0 0.0
      %439 = vmatpush1.msra.mxu0 0.0
      %440 = vmatprep.subr.mxu0 0.0
      %441 = vmatpush1.msra.mxu0 0.0
      %442 = vmatprep.subr.mxu0 0.0
      %443 = vmatpush1.msra.mxu0 0.0
      %444 = vmatprep.subr.mxu0 0.0
      %445 = vmatpush1.msra.mxu0 0.0
      %446 = vmatprep.subr.mxu0 %v425
      %447 = vmatpush1.msra.mxu0 %v424
      %448 = vmatprep.subr.mxu0 %v423
      %449 = vmatpush1.msra.mxu0 %v422
      %450 = vmatprep.subr.mxu0 %v421
      %451 = vmatpush1.msra.mxu0 %v420
      %452 = vmatprep.subr.mxu0 %v419
      %453 = vmatpush1.msra.mxu0 %v418
      %454 = vmatprep.subr.mxu0 %v417
      %455 = vmatpush1.msra.mxu0 %v416
      %456 = vmatprep.subr.mxu0 %v415
      %457 = vmatpush1.msra.mxu0 %v414
      %458 = vmatprep.subr.mxu0 %v413
      %459 = vmatpush1.msra.mxu0 %v412
      %460 = vmatprep.subr.mxu0 %v411
      %461 = vmatpush1.msra.mxu0 %v410
      %462 = vmatprep.subr.mxu0 0.0
      %463 = vmatpush2.msra.mxu0 0.0
      %464 = vmatprep.subr.mxu0 0.0
      %465 = vmatpush2.msra.mxu0 0.0
      %466 = vmatprep.subr.mxu0 0.0
      %467 = vmatpush2.msra.mxu0 0.0
      %468 = vmatprep.subr.mxu0 0.0
      %469 = vmatpush2.msra.mxu0 0.0
      %470 = vmatprep.subr.mxu0 0.0
      %471 = vmatpush2.msra.mxu0 0.0
      %472 = vmatprep.subr.mxu0 0.0
      %473 = vmatpush2.msra.mxu0 0.0
      %474 = vmatprep.subr.mxu0 0.0
      %475 = vmatpush2.msra.mxu0 0.0
      %476 = vmatprep.subr.mxu0 0.0
      %477 = vmatpush2.msra.mxu0 0.0
      %478 = vmatprep.subr.mxu0 0.0
      %479 = vmatpush2.msra.mxu0 0.0
      %480 = vmatprep.subr.mxu0 0.0
      %481 = vmatpush2.msra.mxu0 0.0
      %482 = vmatprep.subr.mxu0 0.0
      %483 = vmatpush2.msra.mxu0 0.0
      %484 = vmatprep.subr.mxu0 0.0
      %485 = vmatpush2.msra.mxu0 0.0
      %486 = vmatprep.subr.mxu0 0.0
      %487 = vmatpush2.msra.mxu0 0.0
      %488 = vmatprep.subr.mxu0 0.0
      %489 = vmatpush2.msra.mxu0 0.0
      %490 = vmatprep.subr.mxu0 0.0
      %491 = vmatpush2.msra.mxu0 0.0
      %492 = vmatprep.subr.mxu0 0.0
      %493 = vmatpush2.msra.mxu0 0.0
      %494 = vmatprep.mubr.f32.mxu0 0.0
      %495 = vmatmul.mubr.f32.gmra.mxu0 %v428
      %v496 = vpop.f32.mrf.mxu0
      %v497 = vadd.f32 0.0, %v496
      %v498 = vpop.f32.mrf.mxu0
      %v499 = vadd.f32 0.0, %v498
      %500 = vdwg.mxu0
      %v503 = vcombine.low %v497, %v499
      %505 = vst [vmem:[%s320] sm:$0xff] %v503
      %v506 = vld [vmem:[%s315] sm:$0xff]
      %v508 = vcombine.high %v506, %v506
      %v510 = vadd.f32 %v497, %v506
      %v511 = vadd.f32 %v499, %v508
      %v514 = vcombine.low %v510, %v511
      %516 = vst [vmem:[%s325] sm:$0xff] %v514
      %p517 = scmp.lt.s32.totalorder %s19, 1
      %s518 = scalar_select %p517, %s19, 1
      %s519 = smul.addr %s518, 2
      %s520 = smul.addr %s519, 4
      %s521 = scalar_lea.vmem %s6, %s520
      %p522 = scmp.lt.s32.totalorder %s19, 1
      %s523 = scalar_select %p522, %s19, 1
      %s524 = smul.addr %s523, 2
      %s525 = smul.addr %s524, 4
      %s526 = scalar_lea.vmem %s7, %s525
      // Predicated region
      $region45: #{seq_add_forward.3} parent=43 // pred_check
        %p527 = pneg %p178
      $region46: #{seq_add_forward.3} parent=43 // pred_check_branch
        %529 = sbr.rel (%p527) target = $region48
      $region47: #{seq_add_forward.3} parent=43 // pred_region
        _
      $region48: #{seq_add_forward.3} parent=43 // pred_fallthru
        _
      // Predicated region
      $region49: #{seq_add_forward.3} parent=43 // pred_check
        %p530 = pneg %p204
      $region50: #{seq_add_forward.3} parent=43 // pred_check_branch
        %532 = sbr.rel (%p530) target = $region52
      $region51: #{seq_add_forward.3} parent=43 // pred_region
        _
      $region52: #{seq_add_forward.3} parent=43 // pred_fallthru
        _
    $region44: #{seq_add_forward.3} parent=5 // pred_fallthru
      _
    %p533 = scmp.le.s32.totalorder 2, %s14
    // Predicated region
    $region53: #{seq_add_forward.3} parent=5 // pred_check
      %p534 = pneg %p533
    $region54: #{seq_add_forward.3} parent=5 // pred_check_branch
      %536 = sbr.rel (%p534) target = $region56
    $region55: #{seq_add_forward.3} parent=5 // pred_region
      %s537 = ssub.s32 %s14, 2
      // Predicated region
      $region57: #{seq_add_forward.3} parent=55 // pred_check
        %p538 = pneg %p184
      $region58: #{seq_add_forward.3} parent=55 // pred_check_branch
        %540 = sbr.rel (%p538) target = $region60
      $region59: #{seq_add_forward.3} parent=55 // pred_region
        %p541 = scmp.lt.s32.totalorder %s20, 1
        %s542 = scalar_select %p541, %s20, 1
        %s543 = smul.addr %s542, 2
        %s544 = smul.addr %s543, 4
        %s545 = scalar_lea.vmem %s6, %s544
      $region60: #{seq_add_forward.3} parent=55 // pred_fallthru
        _
      // Predicated region
      $region61: #{seq_add_forward.3} parent=55 // pred_check
        %p546 = pneg %p210
      $region62: #{seq_add_forward.3} parent=55 // pred_check_branch
        %548 = sbr.rel (%p546) target = $region64
      $region63: #{seq_add_forward.3} parent=55 // pred_region
        %p549 = scmp.lt.s32.totalorder %s20, 1
        %s550 = scalar_select %p549, %s20, 1
        %s551 = smul.addr %s550, 2
        %s552 = smul.addr %s551, 4
        %s553 = scalar_lea.vmem %s7, %s552
      $region64: #{seq_add_forward.3} parent=55 // pred_fallthru
        _
    $region56: #{seq_add_forward.3} parent=5 // pred_fallthru
      _
  $region6: #{seq_add_forward.3} parent=0 // loop_footer
    %s18 = sadd.s32 1, %s14
  $region7: #{seq_add_forward.3} parent=0 // loop_footer_branch
    %13 = sbr.rel target = $region3
  $region8: #{seq_add_forward.3} parent=0 // loop_exit
    _

</llo_original>
